<compile_context>
chip_gen: v7x
topology: tpu7x:2x2x1
jax: 0.10.0
libtpu: 0.0.40
codegen_flags: <defaults>
</compile_context>

<pallas_src>
import functools

import jax
import jax.numpy as jnp
from jax import lax
from jax.experimental import pallas as pl
from jax.experimental.pallas import tpu as pltpu


def _round_up(x: int, m: int) -> int:
    return ((x + m - 1) // m) * m


def _pick_block_m(n: int) -> int:
    """Row-tile size.

    Small batches use a single padded-to-8 block; larger batches use a
    128/256-row tile, preferring an even grid so the single "parallel" axis
    shards evenly across v7x's two TensorCores.
    """
    if n <= 128:
        return _round_up(max(n, 1), 8)
    for cand in (256, 128):
        g = -(-n // cand)
        if g >= 2 and g % 2 == 0:
            return cand
    return 128


def _vmem_capacity_bytes() -> int:
    """Physical VMEM per core (generation-aware), with a safe fallback."""
    try:
        cap = int(pltpu.get_tpu_info().vmem_capacity_bytes)
        if cap > 0:
            return cap
    except Exception:
        pass
    return 128 << 20  # v5e / v6e


# --------------------------------------------------------------------------
# Pass 1: one-shot L2 normalization (F.normalize semantics), folding 1/T into
# out0 and optionally casting to bf16 for the MXU.
# --------------------------------------------------------------------------
def _normalize_kernel(x0_ref, x1_ref, o0_ref, o1_ref, *, scale0: float):
    # F.normalize: x / max(||x||, 1e-12) == x * rsqrt(max(||x||^2, 1e-24)).
    eps2 = 1e-24

    def _norm(x, scale):
        x = x.astype(jnp.float32)
        ss = jnp.sum(x * x, axis=1, keepdims=True)
        return x * (lax.rsqrt(jnp.maximum(ss, eps2)) * scale)

    o0_ref[...] = _norm(x0_ref[...], scale0).astype(o0_ref.dtype)
    o1_ref[...] = _norm(x1_ref[...], 1.0).astype(o1_ref.dtype)


# --------------------------------------------------------------------------
# Pass 2: row-tiled logits + symmetric cross-entropy partial losses.
# --------------------------------------------------------------------------
def _clip_loss_kernel(n0_ref, n1_ref, logits_ref, partial_ref, *,
                      lambda_0: float, n_valid: int, n_pad: int,
                      block_m: int):
    lambda_1 = 1.0 - lambda_0
    i = pl.program_id(0)
    row0 = pl.multiple_of(i * block_m, block_m)

    # Row blocks of the already-normalized (and 1/T-scaled) operands.
    n0b = n0_ref[pl.ds(row0, block_m), :]          # (TM, D), carries 1/T
    n1b = n1_ref[pl.ds(row0, block_m), :]          # (TM, D)

    # A @ B^T, contracting the feature dim of both operands (MXU-native, no
    # transpose pass).  logits_t is the matching row block of logits.T.
    dn = (((1,), (1,)), ((), ()))
    logits = lax.dot_general(n0b, n1_ref[...], dn,
                             preferred_element_type=jnp.float32)   # (TM, Np)
    logits_t = lax.dot_general(n1b, n0_ref[...], dn,
                               preferred_element_type=jnp.float32)  # (TM, Np)

    # Diagonal targets logits[r, r]: (TM, D) row-wise dot products of the two
    # row blocks (same operands the MXU saw; 1/T already folded into n0).
    # logits.T[r, r] == logits[r, r], so both CE terms share it.
    diag = jnp.sum(n0b.astype(jnp.float32) * n1b.astype(jnp.float32),
                   axis=1, keepdims=True)                           # (TM, 1)

    if n_pad != n_valid:
        # Padded batch: exclude pad columns from the LSE and pad rows from the
        # partial sum.  (Static branch — no mask work when N is aligned.)
        col = lax.broadcasted_iota(jnp.int32, (block_m, n_pad), 1)
        col_ok = col < n_valid
        lse_in0 = jnp.where(col_ok, logits, -1e30)
        lse_in1 = jnp.where(col_ok, logits_t, -1e30)
        rows = lax.broadcasted_iota(jnp.int32, (block_m, 1), 0) + row0
        row_ok = (rows < n_valid).astype(jnp.float32)               # (TM, 1)
    else:
        lse_in0, lse_in1 = logits, logits_t
        row_ok = None

    def _ce_partial_sum(lg):
        # sum_j ( logsumexp(lg[j, :]) - diag[j] ), lane-axis reductions only.
        m = jnp.max(lg, axis=1, keepdims=True)
        lse = m + jnp.log(jnp.sum(jnp.exp(lg - m), axis=1, keepdims=True))
        per_row = lse - diag
        if row_ok is not None:
            per_row = per_row * row_ok
        return jnp.sum(per_row)

    partial = (lambda_0 * _ce_partial_sum(lse_in0) +
               lambda_1 * _ce_partial_sum(lse_in1)) * (1.0 / n_valid)

    logits_ref[...] = logits
    # Broadcast the per-block partial over a lane-dense tile; the wrapper
    # reads element [0, 0] of each block (no iota/where, no masked store).
    partial_ref[...] = jnp.full((1, 8, 128), partial, dtype=jnp.float32)


def clip_loss(out0: jax.Array, out1: jax.Array, temperature: float,
              lambda_0: float = 0.5, bf16_matmul: bool = False):
    """Returns (loss, logits, labels) matching CLIPLoss.forward.

    bf16_matmul=True casts the normalized operands to bf16 for the MXU
    (recommended on v6e/v7x, ~1e-2-level logits deviation; f32 accumulation).
    """
    if not (0.0 <= lambda_0 <= 1.0):
        raise ValueError("lambda_0 must be a float between 0 and 1.")
    n, d = out0.shape
    assert out1.shape == (n, d)

    block_m = _pick_block_m(n)
    n_pad = _round_up(n, block_m)
    grid = n_pad // block_m
    mm_dtype = jnp.bfloat16 if bf16_matmul else jnp.float32

    if n_pad != n:
        pad = ((0, n_pad - n), (0, 0))
        out0 = jnp.pad(out0, pad)
        out1 = jnp.pad(out1, pad)

    # ---- Pass 1: normalize once (+ fold 1/T into out0, optional bf16 cast).
    inv_t = 1.0 / float(temperature)
    n0s, n1s = pl.pallas_call(
        functools.partial(_normalize_kernel, scale0=inv_t),
        grid=(grid,),
        out_shape=(jax.ShapeDtypeStruct((n_pad, d), mm_dtype),
                   jax.ShapeDtypeStruct((n_pad, d), mm_dtype)),
        in_specs=[pl.BlockSpec((block_m, d), lambda i: (i, 0)),
                  pl.BlockSpec((block_m, d), lambda i: (i, 0))],
        out_specs=(pl.BlockSpec((block_m, d), lambda i: (i, 0)),
                   pl.BlockSpec((block_m, d), lambda i: (i, 0))),
        compiler_params=pltpu.CompilerParams(
            dimension_semantics=("parallel",)),
    )(out0, out1)

    # ---- Pass 2: logits + partial losses.
    # VMEM budget: single-copy resident operands + double-buffered (TM, Np)
    # logits output block + logits_t / LSE temporaries + headroom; clamp to
    # ~85% of this generation's physical VMEM (64 MiB v7x, 128 MiB v5e/v6e).
    mm_isz = jnp.dtype(mm_dtype).itemsize
    est = (2 * n_pad * d * mm_isz
           + 2 * block_m * n_pad * 4
           + 3 * block_m * n_pad * 4
           + (4 << 20))
    cap = _vmem_capacity_bytes()
    vmem_limit = int(min(max(est, 32 << 20), int(cap * 0.85)))

    kernel = functools.partial(
        _clip_loss_kernel, lambda_0=float(lambda_0), n_valid=n,
        n_pad=n_pad, block_m=block_m)

    logits_pad, partials = pl.pallas_call(
        kernel,
        grid=(grid,),
        out_shape=(
            jax.ShapeDtypeStruct((n_pad, n_pad), jnp.float32),   # logits
            jax.ShapeDtypeStruct((grid, 8, 128), jnp.float32),   # partials
        ),
        in_specs=[
            # Whole normalized arrays resident in VMEM (single copy each).
            pl.BlockSpec(memory_space=pltpu.MemorySpace.VMEM),
            pl.BlockSpec(memory_space=pltpu.MemorySpace.VMEM),
        ],
        out_specs=(
            pl.BlockSpec((block_m, n_pad), lambda i: (i, 0)),
            pl.BlockSpec((1, 8, 128), lambda i: (i, 0, 0)),
        ),
        compiler_params=pltpu.CompilerParams(
            dimension_semantics=("parallel",),
            vmem_limit_bytes=vmem_limit,
        ),
    )(n0s, n1s)

    logits = logits_pad[:n, :n] if n_pad != n else logits_pad
    loss = jnp.sum(partials[:, 0, 0])
    labels = jnp.arange(n, dtype=jnp.int32)
    return loss, logits, labels


def _reference(out0, out1, temperature, lambda_0):
    """Pure-JAX reference mirroring the PyTorch module."""
    eps2 = 1e-24
    n0 = out0 * lax.rsqrt(jnp.maximum(
        jnp.sum(out0 * out0, axis=1, keepdims=True), eps2))
    n1 = out1 * lax.rsqrt(jnp.maximum(
        jnp.sum(out1 * out1, axis=1, keepdims=True), eps2))
    logits = (n0 @ n1.T) / temperature
    labels = jnp.arange(out0.shape[0])

    def ce(lg):
        lse = jax.scipy.special.logsumexp(lg, axis=1)
        tgt = lg[jnp.arange(lg.shape[0]), labels]
        return jnp.mean(lse - tgt)

    loss = lambda_0 * ce(logits) + (1.0 - lambda_0) * ce(logits.T)
    return loss, logits, labels


if __name__ == "__main__":
    key = jax.random.PRNGKey(0)
    k0, k1, k2, k3, k4, k5 = jax.random.split(key, 6)

    # 1) Small CLIPLoss-consistent shapes: batch of 8 subjects, 32-dim embeds.
    temperature, lambda_0 = 0.1, 0.5
    N, D = 8, 32
    out0 = jax.random.normal(k0, (N, D), dtype=jnp.float32)
    out1 = jax.random.normal(k1, (N, D), dtype=jnp.float32)
    loss, logits, labels = jax.jit(
        lambda a, b: clip_loss(a, b, temperature, lambda_0))(out0, out1)
    jax.block_until_ready((loss, logits, labels))
    ref_loss, ref_logits, ref_labels = _reference(out0, out1, temperature,
                                                  lambda_0)
    assert jnp.allclose(loss, ref_loss, atol=1e-4, rtol=1e-4)
    assert jnp.allclose(logits, ref_logits, atol=1e-4, rtol=1e-4)
    assert jnp.array_equal(labels, ref_labels.astype(jnp.int32))

    # 2) Row-tiled path (grid=2), N divisible by the tile.
    N2, D2 = 256, 64
    a = jax.random.normal(k2, (N2, D2), dtype=jnp.float32)
    b = jax.random.normal(k3, (N2, D2), dtype=jnp.float32)
    loss2, logits2, _ = jax.jit(
        lambda x, y: clip_loss(x, y, temperature, lambda_0))(a, b)
    jax.block_until_ready((loss2, logits2))
    ref_loss2, ref_logits2, _ = _reference(a, b, temperature, lambda_0)
    assert jnp.allclose(loss2, ref_loss2, atol=1e-4, rtol=1e-4)
    assert jnp.allclose(logits2, ref_logits2, atol=1e-4, rtol=1e-4)

    # 3) Non-aligned N (padding + in-kernel masking), asymmetric lambdas.
    N3, D3, temp3, lam3 = 200, 48, 0.2, 0.7
    c = jax.random.normal(k4, (N3, D3), dtype=jnp.float32)
    e = jax.random.normal(k5, (N3, D3), dtype=jnp.float32)
    loss3, logits3, labels3 = jax.jit(
        lambda x, y: clip_loss(x, y, temp3, lam3))(c, e)
    jax.block_until_ready((loss3, logits3))
    ref_loss3, ref_logits3, ref_labels3 = _reference(c, e, temp3, lam3)
    assert logits3.shape == (N3, N3)
    assert jnp.allclose(loss3, ref_loss3, atol=1e-4, rtol=1e-4)
    assert jnp.allclose(logits3, ref_logits3, atol=1e-4, rtol=1e-4)
    assert jnp.array_equal(labels3, ref_labels3.astype(jnp.int32))

    # 4) bf16 MXU path (recommended on v6e/v7x); f32 accumulation, so only a
    #    small precision deviation vs the f32 reference is expected.
    loss4, logits4, _ = jax.jit(
        lambda x, y: clip_loss(x, y, temperature, lambda_0,
                               bf16_matmul=True))(a, b)
    jax.block_until_ready((loss4, logits4))
    assert jnp.allclose(loss4, ref_loss2, atol=1e-1, rtol=1e-1)
    assert jnp.allclose(logits4, ref_logits2, atol=2.5e-1, rtol=1e-1)

    print("KERNEL_OK")
</pallas_src>

<mosaic_0001>
module attributes {stable_mosaic.version = 11 : i64} {
  func.func @_normalize_kernel(%arg0: i32, %arg1: memref<8x32xf32, #tpu.memory_space<vmem>>, %arg2: memref<8x32xf32, #tpu.memory_space<vmem>>, %arg3: memref<8x32xf32, #tpu.memory_space<vmem>>, %arg4: memref<8x32xf32, #tpu.memory_space<vmem>>) attributes {dimension_semantics = [#tpu.dimension_semantics<parallel>], iteration_bounds = array<i64: 1>, scalar_prefetch = 0 : i64, scratch_operands = 0 : i64, tpu.core_type = #tpu.core_type<tc>, window_params = [{transform_indices = @transform_0, window_bounds = array<i64: 8, 32>}, {transform_indices = @transform_1, window_bounds = array<i64: 8, 32>}, {transform_indices = @transform_2, window_bounds = array<i64: 8, 32>}, {transform_indices = @transform_3, window_bounds = array<i64: 8, 32>}]} {
    %c0 = arith.constant 0 : index
    %c0_0 = arith.constant 0 : index
    %0 = vector.load %arg1[%c0, %c0_0] : memref<8x32xf32, #tpu.memory_space<vmem>>, vector<8x32xf32>
    %1 = arith.mulf %0, %0 : vector<8x32xf32>
    %cst = arith.constant dense<0.000000e+00> : vector<8xf32>
    %2 = vector.multi_reduction <add>, %1, %cst [1] : vector<8x32xf32> to vector<8xf32>
    %3 = vector.shape_cast %2 : vector<8xf32> to vector<8x1xf32>
    %cst_1 = arith.constant 1.000000e-24 : f32
    %4 = vector.broadcast %cst_1 : f32 to vector<8x1xf32>
    %5 = arith.maximumf %3, %4 : vector<8x1xf32>
    %6 = math.rsqrt %5 : vector<8x1xf32>
    %cst_2 = arith.constant 1.000000e+01 : f32
    %7 = vector.broadcast %cst_2 : f32 to vector<8x1xf32>
    %8 = arith.mulf %6, %7 : vector<8x1xf32>
    %9 = vector.broadcast %8 : vector<8x1xf32> to vector<8x32xf32>
    %10 = arith.mulf %0, %9 : vector<8x32xf32>
    %c0_3 = arith.constant 0 : index
    %c0_4 = arith.constant 0 : index
    %11 = vector.load %arg3[%c0_3, %c0_4] : memref<8x32xf32, #tpu.memory_space<vmem>>, vector<8x32xf32>
    tpu.vector_store %arg3[%c0_3, %c0_4], %10 {strides = array<i32>} : memref<8x32xf32, #tpu.memory_space<vmem>>, vector<8x32xf32>,
    %c0_5 = arith.constant 0 : index
    %c0_6 = arith.constant 0 : index
    %12 = vector.load %arg2[%c0_5, %c0_6] : memref<8x32xf32, #tpu.memory_space<vmem>>, vector<8x32xf32>
    %13 = arith.mulf %12, %12 : vector<8x32xf32>
    %cst_7 = arith.constant dense<0.000000e+00> : vector<8xf32>
    %14 = vector.multi_reduction <add>, %13, %cst_7 [1] : vector<8x32xf32> to vector<8xf32>
    %15 = vector.shape_cast %14 : vector<8xf32> to vector<8x1xf32>
    %cst_8 = arith.constant 1.000000e-24 : f32
    %16 = vector.broadcast %cst_8 : f32 to vector<8x1xf32>
    %17 = arith.maximumf %15, %16 : vector<8x1xf32>
    %18 = math.rsqrt %17 : vector<8x1xf32>
    %cst_9 = arith.constant 1.000000e+00 : f32
    %19 = vector.broadcast %cst_9 : f32 to vector<8x1xf32>
    %20 = arith.mulf %18, %19 : vector<8x1xf32>
    %21 = vector.broadcast %20 : vector<8x1xf32> to vector<8x32xf32>
    %22 = arith.mulf %12, %21 : vector<8x32xf32>
    %c0_10 = arith.constant 0 : index
    %c0_11 = arith.constant 0 : index
    %23 = vector.load %arg4[%c0_10, %c0_11] : memref<8x32xf32, #tpu.memory_space<vmem>>, vector<8x32xf32>
    tpu.vector_store %arg4[%c0_10, %c0_11], %22 {strides = array<i32>} : memref<8x32xf32, #tpu.memory_space<vmem>>, vector<8x32xf32>,
    return
  }
  func.func @transform_0(%arg0: i32) -> (i32, i32) {
    %c0_i32 = arith.constant 0 : i32
    %c0_i32_0 = arith.constant 0 : i32
    return %arg0, %c0_i32 : i32, i32
  }
  func.func @transform_1(%arg0: i32) -> (i32, i32) {
    %c0_i32 = arith.constant 0 : i32
    %c0_i32_0 = arith.constant 0 : i32
    return %arg0, %c0_i32 : i32, i32
  }
  func.func @transform_2(%arg0: i32) -> (i32, i32) {
    %c0_i32 = arith.constant 0 : i32
    %c0_i32_0 = arith.constant 0 : i32
    return %arg0, %c0_i32 : i32, i32
  }
  func.func @transform_3(%arg0: i32) -> (i32, i32) {
    %c0_i32 = arith.constant 0 : i32
    %c0_i32_0 = arith.constant 0 : i32
    return %arg0, %c0_i32 : i32, i32
  }
}

module attributes {stable_mosaic.version = 11 : i64} {
  func.func @_clip_loss_kernel(%arg0: i32, %arg1: memref<8x32xf32, #tpu.memory_space<vmem>>, %arg2: memref<8x32xf32, #tpu.memory_space<vmem>>, %arg3: memref<8x8xf32, #tpu.memory_space<vmem>>, %arg4: memref<1x8x128xf32, #tpu.memory_space<vmem>>) attributes {dimension_semantics = [#tpu.dimension_semantics<parallel>], iteration_bounds = array<i64: 1>, scalar_prefetch = 0 : i64, scratch_operands = 0 : i64, tpu.core_type = #tpu.core_type<tc>, window_params = [{pipeline_mode = #tpu.pipeline_mode<synchronous>, transform_indices = @transform_0, window_bounds = array<i64: 8, 32>}, {pipeline_mode = #tpu.pipeline_mode<synchronous>, transform_indices = @transform_1, window_bounds = array<i64: 8, 32>}, {transform_indices = @transform_2, window_bounds = array<i64: 8, 8>}, {transform_indices = @transform_3, window_bounds = array<i64: 1, 8, 128>}]} {
    %c8_i32 = arith.constant 8 : i32
    %0 = arith.muli %arg0, %c8_i32 : i32
    %1 = tpu.assume_multiple %0, 8 : i32
    %2 = arith.index_cast %1 : i32 to index
    %c0 = arith.constant 0 : index
    %3 = vector.load %arg1[%2, %c0] : memref<8x32xf32, #tpu.memory_space<vmem>>, vector<8x32xf32>
    %4 = arith.index_cast %1 : i32 to index
    %c0_0 = arith.constant 0 : index
    %5 = vector.load %arg2[%4, %c0_0] : memref<8x32xf32, #tpu.memory_space<vmem>>, vector<8x32xf32>
    %c0_1 = arith.constant 0 : index
    %c0_2 = arith.constant 0 : index
    %6 = vector.load %arg2[%c0_1, %c0_2] : memref<8x32xf32, #tpu.memory_space<vmem>>, vector<8x32xf32>
    %cst = arith.constant dense<0.000000e+00> : vector<8x8xf32>
    %7 = tpu.matmul %3, %6, %cst {dimension_numbers = #tpu.dot_dimension_numbers<[1], [1], [0], [0], [0, 0, 1, 0], [], []>} : vector<8x32xf32>, vector<8x32xf32>, vector<8x8xf32> -> vector<8x8xf32>
    %c0_3 = arith.constant 0 : index
    %c0_4 = arith.constant 0 : index
    %8 = vector.load %arg1[%c0_3, %c0_4] : memref<8x32xf32, #tpu.memory_space<vmem>>, vector<8x32xf32>
    %cst_5 = arith.constant dense<0.000000e+00> : vector<8x8xf32>
    %9 = tpu.matmul %5, %8, %cst_5 {dimension_numbers = #tpu.dot_dimension_numbers<[1], [1], [0], [0], [0, 0, 1, 0], [], []>} : vector<8x32xf32>, vector<8x32xf32>, vector<8x8xf32> -> vector<8x8xf32>
    %10 = arith.mulf %3, %5 : vector<8x32xf32>
    %cst_6 = arith.constant dense<0.000000e+00> : vector<8xf32>
    %11 = vector.multi_reduction <add>, %10, %cst_6 [1] : vector<8x32xf32> to vector<8xf32>
    %12 = vector.shape_cast %11 : vector<8xf32> to vector<8x1xf32>
    %cst_7 = arith.constant dense<0xFF800000> : vector<8xf32>
    %13 = vector.multi_reduction <maximumf>, %7, %cst_7 [1] : vector<8x8xf32> to vector<8xf32>
    %14 = vector.shape_cast %13 : vector<8xf32> to vector<8x1xf32>
    %15 = vector.broadcast %14 : vector<8x1xf32> to vector<8x8xf32>
    %16 = arith.subf %7, %15 : vector<8x8xf32>
    %17 = math.exp %16 : vector<8x8xf32>
    %cst_8 = arith.constant dense<0.000000e+00> : vector<8xf32>
    %18 = vector.multi_reduction <add>, %17, %cst_8 [1] : vector<8x8xf32> to vector<8xf32>
    %19 = vector.shape_cast %18 : vector<8xf32> to vector<8x1xf32>
    %20 = math.log %19 : vector<8x1xf32>
    %21 = arith.addf %14, %20 : vector<8x1xf32>
    %22 = arith.subf %21, %12 : vector<8x1xf32>
    %23 = vector.shape_cast %22 : vector<8x1xf32> to vector<1x8x1xf32>
    %cst_9 = arith.constant dense<0.000000e+00> : vector<1xf32>
    %24 = vector.multi_reduction <add>, %23, %cst_9 [1, 2] : vector<1x8x1xf32> to vector<1xf32>
    %25 = vector.shape_cast %24 : vector<1xf32> to vector<1x1x1xf32>
    %26 = vector.extract %25[0, 0, 0] : f32 from vector<1x1x1xf32>
    %cst_10 = arith.constant 5.000000e-01 : f32
    %27 = arith.mulf %cst_10, %26 : f32
    %cst_11 = arith.constant dense<0xFF800000> : vector<8xf32>
    %28 = vector.multi_reduction <maximumf>, %9, %cst_11 [1] : vector<8x8xf32> to vector<8xf32>
    %29 = vector.shape_cast %28 : vector<8xf32> to vector<8x1xf32>
    %30 = vector.broadcast %29 : vector<8x1xf32> to vector<8x8xf32>
    %31 = arith.subf %9, %30 : vector<8x8xf32>
    %32 = math.exp %31 : vector<8x8xf32>
    %cst_12 = arith.constant dense<0.000000e+00> : vector<8xf32>
    %33 = vector.multi_reduction <add>, %32, %cst_12 [1] : vector<8x8xf32> to vector<8xf32>
    %34 = vector.shape_cast %33 : vector<8xf32> to vector<8x1xf32>
    %35 = math.log %34 : vector<8x1xf32>
    %36 = arith.addf %29, %35 : vector<8x1xf32>
    %37 = arith.subf %36, %12 : vector<8x1xf32>
    %38 = vector.shape_cast %37 : vector<8x1xf32> to vector<1x8x1xf32>
    %cst_13 = arith.constant dense<0.000000e+00> : vector<1xf32>
    %39 = vector.multi_reduction <add>, %38, %cst_13 [1, 2] : vector<1x8x1xf32> to vector<1xf32>
    %40 = vector.shape_cast %39 : vector<1xf32> to vector<1x1x1xf32>
    %41 = vector.extract %40[0, 0, 0] : f32 from vector<1x1x1xf32>
    %cst_14 = arith.constant 5.000000e-01 : f32
    %42 = arith.mulf %cst_14, %41 : f32
    %43 = arith.addf %27, %42 : f32
    %cst_15 = arith.constant 1.250000e-01 : f32
    %44 = arith.mulf %43, %cst_15 : f32
    %c0_16 = arith.constant 0 : index
    %c0_17 = arith.constant 0 : index
    %45 = vector.load %arg3[%c0_16, %c0_17] : memref<8x8xf32, #tpu.memory_space<vmem>>, vector<8x8xf32>
    tpu.vector_store %arg3[%c0_16, %c0_17], %7 {strides = array<i32>} : memref<8x8xf32, #tpu.memory_space<vmem>>, vector<8x8xf32>,
    %46 = vector.broadcast %44 : f32 to vector<1x8x128xf32>
    %c0_18 = arith.constant 0 : index
    %c0_19 = arith.constant 0 : index
    %c0_20 = arith.constant 0 : index
    %47 = vector.load %arg4[%c0_18, %c0_19, %c0_20] : memref<1x8x128xf32, #tpu.memory_space<vmem>>, vector<1x8x128xf32>
    tpu.vector_store %arg4[%c0_18, %c0_19, %c0_20], %46 {strides = array<i32>} : memref<1x8x128xf32, #tpu.memory_space<vmem>>, vector<1x8x128xf32>,
    return
  }
  func.func @transform_0(%arg0: i32) -> (i32, i32) {
    %c0_i32 = arith.constant 0 : i32
    %c0_i32_0 = arith.constant 0 : i32
    %c0_i32_1 = arith.constant 0 : i32
    return %c0_i32, %c0_i32_0 : i32, i32
  }
  func.func @transform_1(%arg0: i32) -> (i32, i32) {
    %c0_i32 = arith.constant 0 : i32
    %c0_i32_0 = arith.constant 0 : i32
    %c0_i32_1 = arith.constant 0 : i32
    return %c0_i32, %c0_i32_0 : i32, i32
  }
  func.func @transform_2(%arg0: i32) -> (i32, i32) {
    %c0_i32 = arith.constant 0 : i32
    %c0_i32_0 = arith.constant 0 : i32
    return %arg0, %c0_i32 : i32, i32
  }
  func.func @transform_3(%arg0: i32) -> (i32, i32, i32) {
    %c0_i32 = arith.constant 0 : i32
    %c0_i32_0 = arith.constant 0 : i32
    %c0_i32_1 = arith.constant 0 : i32
    return %arg0, %c0_i32, %c0_i32_0 : i32, i32, i32
  }
}

</mosaic_0001>

<llo_original>
// kernel: _lambda_.2
$region0: #{_lambda_.2}
  #allocation0 [shape = 'u32[]', space=smem, size = 0x4, offset = 0x4, fixed_abs, tag = 'smem constant byte address 0x4 - core index']
  #allocation1 [shape = 'u32[144,128]{1,0:T(1,128)}', space=vmem, size = 0x12000, scoped, tag = 'internal scratch']
  %s0 = inlined_call_operand.hbm [shape: f32[8,32], index: 0, kind: input, shape index: {}]
  %s1 = inlined_call_operand.hbm [shape: f32[8,32], index: 1, kind: input, shape index: {}]
  %s2 = inlined_call_operand.vmem [shape: f32[8,32], index: 2, kind: output, shape index: {0}]
  %s3 = inlined_call_operand.vmem [shape: f32[8,32], index: 3, kind: output, shape index: {1}]
  %4 = xla_tuple %s2, %s3
  %s5 = sld [smem:[#allocation0]]
  $region34: #{_lambda_.2} parent=0
    _
  %s7 = ssub.s32 1, %s5
  %s8 = scalar_select 0, %s7, %s5
  $region1: #{_lambda_.2} parent=0
    #allocation2 [shape = 'u8[4096]{0}', space=vmem, size = 0x1000, scoped, tag = 'input window, operand 0, single buffered']
    #allocation3 [shape = 's32[1]{0}', space=sflag, size = 0x4, scoped, tag = 'scoped memory for _lambda_.2']
    #allocation4 [shape = 'u8[4096]{0}', space=vmem, size = 0x1000, scoped, tag = 'input window, operand 1, single buffered']
    #allocation5 [shape = 's32[1]{0}', space=sflag, size = 0x4, scoped, tag = 'scoped memory for _lambda_.2']
    %9 = vsyncpa [#allocation3], 0
    %10 = vsyncpa [#allocation5], 0
    // Predicated region
    $region2: #{_lambda_.2} parent=1 // pred_check
      _
    $region3: #{_lambda_.2} parent=1 // pred_check_branch
      %12 = sbr.rel (0) target = $region5
    $region4: #{_lambda_.2} parent=1 // pred_region
      %s14 = ssub.s32 128, 128
      %15 = vsyncadd [#allocation3], %s14
      %s17 = sshll.u32 [#allocation2], 4
      %s18 = int_to_ptr.vmem [resolvable:$true] %s17
      %20 = dma.hbm_to_vmem [thread:$0]  %s0, 128, %s18, [#allocation3]
    $region5: #{_lambda_.2} parent=1 // pred_fallthru
      _
    // Predicated region
    $region6: #{_lambda_.2} parent=1 // pred_check
      _
    $region7: #{_lambda_.2} parent=1 // pred_check_branch
      %22 = sbr.rel (0) target = $region9
    $region8: #{_lambda_.2} parent=1 // pred_region
      %s24 = ssub.s32 128, 128
      %25 = vsyncadd [#allocation5], %s24
      %s27 = sshll.u32 [#allocation4], 4
      %s28 = int_to_ptr.vmem [resolvable:$true] %s27
      %30 = dma.hbm_to_vmem [thread:$0]  %s1, 128, %s28, [#allocation5]
    $region9: #{_lambda_.2} parent=1 // pred_fallthru
      _
    // Predicated region
    $region10: #{_lambda_.2} parent=1 // pred_check
      _
    $region11: #{_lambda_.2} parent=1 // pred_check_branch
      %32 = sbr.rel (0) target = $region13
    $region12: #{_lambda_.2} parent=1 // pred_region
      %33 = dma.done [#allocation3], 128
    $region13: #{_lambda_.2} parent=1 // pred_fallthru
      _
    // Predicated region
    $region14: #{_lambda_.2} parent=1 // pred_check
      _
    $region15: #{_lambda_.2} parent=1 // pred_check_branch
      %35 = sbr.rel (0) target = $region17
    $region16: #{_lambda_.2} parent=1 // pred_region
      %36 = dma.done [#allocation5], 128
    $region17: #{_lambda_.2} parent=1 // pred_fallthru
      _
    %v37 = vld [vmem:[#allocation2] sm:$0xff]
    %v38 = vmul.f32 %v37, %v37
    %vm39 = vcmask 261120
    %v40 = vsel %vm39, %v38, 0.0
    %41 = vadd.xlane.f32.xlu0 %v40
    %v42 = vpop.xlane.xlu0 %41
    %v43 = vmax.f32 %v42, 1e-24
    %v44 = vrsqrt.pop %v43
    %v45 = vmul.f32 %v44, 10.0
    %v46 = vmul.f32 %v37, %v45
    %47 = vst.msk [vmem:[%s2] sm:$0xff] %vm39, %v46
    %v48 = vld [vmem:[#allocation4] sm:$0xff]
    %v49 = vmul.f32 %v48, %v48
    %v50 = vsel %vm39, %v49, 0.0
    %51 = vadd.xlane.f32.xlu0 %v50
    %v52 = vpop.xlane.xlu0 %51
    %v53 = vmax.f32 %v52, 1e-24
    %v54 = vrsqrt.pop %v53
    %v55 = vmul.f32 %v48, %v54
    %56 = vst.msk [vmem:[%s3] sm:$0xff] %vm39, %v55
    // Predicated region
    $region18: #{_lambda_.2} parent=1 // pred_check
      _
    $region19: #{_lambda_.2} parent=1 // pred_check_branch
      %58 = sbr.rel (0) target = $region21
    $region20: #{_lambda_.2} parent=1 // pred_region
      _
    $region21: #{_lambda_.2} parent=1 // pred_fallthru
      _
    // Predicated region
    $region22: #{_lambda_.2} parent=1 // pred_check
      _
    $region23: #{_lambda_.2} parent=1 // pred_check_branch
      %60 = sbr.rel (0) target = $region25
    $region24: #{_lambda_.2} parent=1 // pred_region
      _
    $region25: #{_lambda_.2} parent=1 // pred_fallthru
      _
    // Predicated region
    $region26: #{_lambda_.2} parent=1 // pred_check
      _
    $region27: #{_lambda_.2} parent=1 // pred_check_branch
      %62 = sbr.rel (0) target = $region29
    $region28: #{_lambda_.2} parent=1 // pred_region
      _
    $region29: #{_lambda_.2} parent=1 // pred_fallthru
      _
    // Predicated region
    $region30: #{_lambda_.2} parent=1 // pred_check
      _
    $region31: #{_lambda_.2} parent=1 // pred_check_branch
      %64 = sbr.rel (0) target = $region33
    $region32: #{_lambda_.2} parent=1 // pred_region
      _
    $region33: #{_lambda_.2} parent=1 // pred_fallthru
      _
    %65 = vsyncpa [#allocation3], 1
    %66 = vsyncpa [#allocation5], 1

// kernel: _lambda_.3
$region0: #{_lambda_.3}
  #allocation0 [shape = 'u32[]', space=smem, size = 0x4, offset = 0x4, fixed_abs, tag = 'smem constant byte address 0x4 - core index']
  #allocation1 [shape = 'u32[144,128]{1,0:T(1,128)}', space=vmem, size = 0x12000, scoped, tag = 'internal scratch']
  %s0 = inlined_call_operand.vmem [shape: f32[8,32], index: 0, kind: input, shape index: {}]
  %s1 = inlined_call_operand.vmem [shape: f32[8,32], index: 1, kind: input, shape index: {}]
  %s2 = inlined_call_operand.hbm [shape: f32[8,8], index: 2, kind: output, shape index: {0}]
  %s3 = inlined_call_operand.vmem [shape: f32[1,8,128], index: 3, kind: output, shape index: {1}]
  %4 = xla_tuple %s2, %s3
  %s5 = sld [smem:[#allocation0]]
  $region26: #{_lambda_.3} parent=0
    _
  %s7 = ssub.s32 1, %s5
  %s8 = scalar_select 0, %s7, %s5
  $region1: #{_lambda_.3} parent=0
    #allocation2 [shape = 'u8[4096]{0}', space=vmem, size = 0x1000, scoped, tag = 'output window, operand 0, single buffered']
    #allocation3 [shape = 's32[1]{0}', space=sflag, size = 0x4, scoped, tag = 'scoped memory for _lambda_.3']
    %9 = vsyncpa [#allocation3], 0
    // Predicated region
    $region2: #{_lambda_.3} parent=1 // pred_check
      _
    $region3: #{_lambda_.3} parent=1 // pred_check_branch
      %11 = sbr.rel (0) target = $region5
    $region4: #{_lambda_.3} parent=1 // pred_region
      _
    $region5: #{_lambda_.3} parent=1 // pred_fallthru
      _
    // Predicated region
    $region6: #{_lambda_.3} parent=1 // pred_check
      _
    $region7: #{_lambda_.3} parent=1 // pred_check_branch
      %13 = sbr.rel (0) target = $region9
    $region8: #{_lambda_.3} parent=1 // pred_region
      _
    $region9: #{_lambda_.3} parent=1 // pred_fallthru
      _
    %s14 = smul.u32 0, 8
    %s15 = scalar_lea.vmem %s0, %s14
    %v16 = vld [vmem:[%s15] sm:$0xff]
    %s17 = scalar_lea.vmem %s1, %s14
    %v18 = vld [vmem:[%s17] sm:$0xff]
    %v19 = vld [vmem:[%s1] sm:$0xff]
    %vm20 = vcmask 261120
    %v22 = vsel %vm20, %v16, 0
    %v25 = vsel %vm20, %v19, 0
    %27 = vmatprep.subr.mxu0 0.0
    %28 = vmatpush1.xpose.msra.mxu0 %v25
    %29 = vmatprep.subr.mxu0 0.0
    %30 = vmatpush1.xpose.msra.mxu0 0.0
    %31 = vmatprep.subr.mxu0 0.0
    %32 = vmatpush1.xpose.msra.mxu0 0.0
    %33 = vmatprep.subr.mxu0 0.0
    %34 = vmatpush1.xpose.msra.mxu0 0.0
    %35 = vmatprep.subr.mxu0 0.0
    %36 = vmatpush1.xpose.msra.mxu0 0.0
    %37 = vmatprep.subr.mxu0 0.0
    %38 = vmatpush1.xpose.msra.mxu0 0.0
    %39 = vmatprep.subr.mxu0 0.0
    %40 = vmatpush1.xpose.msra.mxu0 0.0
    %41 = vmatprep.subr.mxu0 0.0
    %42 = vmatpush1.xpose.msra.mxu0 0.0
    %43 = vmatprep.subr.mxu0 0.0
    %44 = vmatpush1.xpose.msra.mxu0 0.0
    %45 = vmatprep.subr.mxu0 0.0
    %46 = vmatpush1.xpose.msra.mxu0 0.0
    %47 = vmatprep.subr.mxu0 0.0
    %48 = vmatpush1.xpose.msra.mxu0 0.0
    %49 = vmatprep.subr.mxu0 0.0
    %50 = vmatpush1.xpose.msra.mxu0 0.0
    %51 = vmatprep.subr.mxu0 0.0
    %52 = vmatpush1.xpose.msra.mxu0 0.0
    %53 = vmatprep.subr.mxu0 0.0
    %54 = vmatpush1.xpose.msra.mxu0 0.0
    %55 = vmatprep.subr.mxu0 0.0
    %56 = vmatpush1.xpose.msra.mxu0 0.0
    %57 = vmatprep.subr.mxu0 0.0
    %58 = vmatpush1.xpose.msra.mxu0 0.0
    %59 = vmatprep.subr.mxu0 0.0
    %60 = vmatpush1.xpose.msra.mxu0 0.0
    %61 = vmatprep.subr.mxu0 0.0
    %62 = vmatpush1.xpose.msra.mxu0 0.0
    %63 = vmatprep.subr.mxu0 0.0
    %64 = vmatpush1.xpose.msra.mxu0 0.0
    %65 = vmatprep.subr.mxu0 0.0
    %66 = vmatpush1.xpose.msra.mxu0 0.0
    %67 = vmatprep.subr.mxu0 0.0
    %68 = vmatpush1.xpose.msra.mxu0 0.0
    %69 = vmatprep.subr.mxu0 0.0
    %70 = vmatpush1.xpose.msra.mxu0 0.0
    %71 = vmatprep.subr.mxu0 0.0
    %72 = vmatpush1.xpose.msra.mxu0 0.0
    %73 = vmatprep.subr.mxu0 0.0
    %74 = vmatpush1.xpose.msra.mxu0 0.0
    %75 = vmatprep.subr.mxu0 0.0
    %76 = vmatpush1.xpose.msra.mxu0 0.0
    %77 = vmatprep.subr.mxu0 0.0
    %78 = vmatpush1.xpose.msra.mxu0 0.0
    %79 = vmatprep.subr.mxu0 0.0
    %80 = vmatpush1.xpose.msra.mxu0 0.0
    %81 = vmatprep.subr.mxu0 0.0
    %82 = vmatpush1.xpose.msra.mxu0 0.0
    %83 = vmatprep.subr.mxu0 0.0
    %84 = vmatpush1.xpose.msra.mxu0 0.0
    %85 = vmatprep.subr.mxu0 0.0
    %86 = vmatpush1.xpose.msra.mxu0 0.0
    %87 = vmatprep.subr.mxu0 0.0
    %88 = vmatpush1.xpose.msra.mxu0 0.0
    %89 = vmatprep.subr.mxu0 0.0
    %90 = vmatpush1.xpose.msra.mxu0 0.0
    %91 = vmatprep.mubr.f32.mxu0 0.0
    %92 = vmatmul.mubr.f32.gmra.mrb[0].mxu0 %v22
    %v93 = vpop.f32.mrb[0].mxu0
    %v94 = vadd.f32 0.0, %v93
    %v95 = vpop.f32.mrb[0].mxu0
    %96 = vdwg.mxu0
    %v97 = vld [vmem:[%s0] sm:$0xff]
    %v99 = vsel %vm20, %v18, 0
    %v102 = vsel %vm20, %v97, 0
    %104 = vmatprep.subr.mxu0 0.0
    %105 = vmatpush1.xpose.msra.mxu0 %v102
    %106 = vmatprep.subr.mxu0 0.0
    %107 = vmatpush1.xpose.msra.mxu0 0.0
    %108 = vmatprep.subr.mxu0 0.0
    %109 = vmatpush1.xpose.msra.mxu0 0.0
    %110 = vmatprep.subr.mxu0 0.0
    %111 = vmatpush1.xpose.msra.mxu0 0.0
    %112 = vmatprep.subr.mxu0 0.0
    %113 = vmatpush1.xpose.msra.mxu0 0.0
    %114 = vmatprep.subr.mxu0 0.0
    %115 = vmatpush1.xpose.msra.mxu0 0.0
    %116 = vmatprep.subr.mxu0 0.0
    %117 = vmatpush1.xpose.msra.mxu0 0.0
    %118 = vmatprep.subr.mxu0 0.0
    %119 = vmatpush1.xpose.msra.mxu0 0.0
    %120 = vmatprep.subr.mxu0 0.0
    %121 = vmatpush1.xpose.msra.mxu0 0.0
    %122 = vmatprep.subr.mxu0 0.0
    %123 = vmatpush1.xpose.msra.mxu0 0.0
    %124 = vmatprep.subr.mxu0 0.0
    %125 = vmatpush1.xpose.msra.mxu0 0.0
    %126 = vmatprep.subr.mxu0 0.0
    %127 = vmatpush1.xpose.msra.mxu0 0.0
    %128 = vmatprep.subr.mxu0 0.0
    %129 = vmatpush1.xpose.msra.mxu0 0.0
    %130 = vmatprep.subr.mxu0 0.0
    %131 = vmatpush1.xpose.msra.mxu0 0.0
    %132 = vmatprep.subr.mxu0 0.0
    %133 = vmatpush1.xpose.msra.mxu0 0.0
    %134 = vmatprep.subr.mxu0 0.0
    %135 = vmatpush1.xpose.msra.mxu0 0.0
    %136 = vmatprep.subr.mxu0 0.0
    %137 = vmatpush1.xpose.msra.mxu0 0.0
    %138 = vmatprep.subr.mxu0 0.0
    %139 = vmatpush1.xpose.msra.mxu0 0.0
    %140 = vmatprep.subr.mxu0 0.0
    %141 = vmatpush1.xpose.msra.mxu0 0.0
    %142 = vmatprep.subr.mxu0 0.0
    %143 = vmatpush1.xpose.msra.mxu0 0.0
    %144 = vmatprep.subr.mxu0 0.0
    %145 = vmatpush1.xpose.msra.mxu0 0.0
    %146 = vmatprep.subr.mxu0 0.0
    %147 = vmatpush1.xpose.msra.mxu0 0.0
    %148 = vmatprep.subr.mxu0 0.0
    %149 = vmatpush1.xpose.msra.mxu0 0.0
    %150 = vmatprep.subr.mxu0 0.0
    %151 = vmatpush1.xpose.msra.mxu0 0.0
    %152 = vmatprep.subr.mxu0 0.0
    %153 = vmatpush1.xpose.msra.mxu0 0.0
    %154 = vmatprep.subr.mxu0 0.0
    %155 = vmatpush1.xpose.msra.mxu0 0.0
    %156 = vmatprep.subr.mxu0 0.0
    %157 = vmatpush1.xpose.msra.mxu0 0.0
    %158 = vmatprep.subr.mxu0 0.0
    %159 = vmatpush1.xpose.msra.mxu0 0.0
    %160 = vmatprep.subr.mxu0 0.0
    %161 = vmatpush1.xpose.msra.mxu0 0.0
    %162 = vmatprep.subr.mxu0 0.0
    %163 = vmatpush1.xpose.msra.mxu0 0.0
    %164 = vmatprep.subr.mxu0 0.0
    %165 = vmatpush1.xpose.msra.mxu0 0.0
    %166 = vmatprep.subr.mxu0 0.0
    %167 = vmatpush1.xpose.msra.mxu0 0.0
    %168 = vmatprep.mubr.f32.mxu0 0.0
    %169 = vmatmul.mubr.f32.gmra.mrb[0].mxu0 %v99
    %v170 = vpop.f32.mrb[0].mxu0
    %v171 = vadd.f32 0.0, %v170
    %v172 = vpop.f32.mrb[0].mxu0
    %173 = vdwg.mxu0
    %v174 = vmul.f32 %v16, %v18
    %v175 = vsel %vm20, %v174, 0.0
    %176 = vadd.xlane.f32.xlu0 %v175
    %v177 = vpop.xlane.xlu0 %176
    %vm178 = vcmask 64512
    %v179 = vsel %vm178, %v94, -inf
    %180 = vmax.xlane.f32.xlu0 %v179
    %v181 = vpop.xlane.xlu0 %180
    %v182 = vsub.f32 %v94, %v181
    %v183 = vmul.f32 %v182, 1.442695
    %v184 = vpow.pop %v183
    %v185 = vsel %vm178, %v184, 0.0
    %186 = vadd.xlane.f32.xlu0 %v185
    %v187 = vpop.xlane.xlu0 %186
    %v188 = vlog2.pop %v187
    %v189 = vmul.f32 %v188, 0.6931472
    %v190 = vadd.f32 %v181, %v189
    %v191 = vsub.f32 %v190, %v177
    %vm192 = vcmask 7168
    %v193 = vsel %vm192, %v191, 0.0
    %194 = vadd.xlane.f32.xlu0 %v193
    %v195 = vpop.xlane.xlu0 %194
    %v196 = vrot.slane %v195, 4
    %v197 = vadd.f32 %v195, %v196
    %v198 = vrot.slane %v197, 2
    %v199 = vadd.f32 %v197, %v198
    %v200 = vrot.slane %v199, 1
    %v201 = vadd.f32 %v199, %v200
    %s202 = vtos %v201
    %s203 = smul.f32 %s202, 0.5
    %v204 = vsel %vm178, %v171, -inf
    %205 = vmax.xlane.f32.xlu0 %v204
    %v206 = vpop.xlane.xlu0 %205
    %v207 = vsub.f32 %v171, %v206
    %v208 = vmul.f32 %v207, 1.442695
    %v209 = vpow.pop %v208
    %v210 = vsel %vm178, %v209, 0.0
    %211 = vadd.xlane.f32.xlu0 %v210
    %v212 = vpop.xlane.xlu0 %211
    %v213 = vlog2.pop %v212
    %v214 = vmul.f32 %v213, 0.6931472
    %v215 = vadd.f32 %v206, %v214
    %v216 = vsub.f32 %v215, %v177
    %v217 = vsel %vm192, %v216, 0.0
    %218 = vadd.xlane.f32.xlu0 %v217
    %v219 = vpop.xlane.xlu0 %218
    %v220 = vrot.slane %v219, 4
    %v221 = vadd.f32 %v219, %v220
    %v222 = vrot.slane %v221, 2
    %v223 = vadd.f32 %v221, %v222
    %v224 = vrot.slane %v223, 1
    %v225 = vadd.f32 %v223, %v224
    %s226 = vtos %v225
    %s227 = smul.f32 %s226, 0.5
    %s228 = sadd.f32 %s203, %s227
    %s229 = smul.f32 %s228, 0.125
    %230 = vst.msk [vmem:[#allocation2] sm:$0xff] %vm178, %v94
    %v231 = vstv %s229
    %232 = vst [vmem:[%s3] sm:$0xff] %v231
    // Predicated region
    $region10: #{_lambda_.3} parent=1 // pred_check
      _
    $region11: #{_lambda_.3} parent=1 // pred_check_branch
      %234 = sbr.rel (0) target = $region13
    $region12: #{_lambda_.3} parent=1 // pred_region
      %s236 = ssub.s32 128, 128
      %237 = vsyncadd [#allocation3], %s236
      %s239 = sshll.u32 [#allocation2], 4
      %s240 = int_to_ptr.vmem [resolvable:$true] %s239
      %242 = dma.vmem_to_hbm [thread:$0]  %s240, 128, %s2, [#allocation3]
    $region13: #{_lambda_.3} parent=1 // pred_fallthru
      _
    // Predicated region
    $region14: #{_lambda_.3} parent=1 // pred_check
      _
    $region15: #{_lambda_.3} parent=1 // pred_check_branch
      %244 = sbr.rel (0) target = $region17
    $region16: #{_lambda_.3} parent=1 // pred_region
      _
    $region17: #{_lambda_.3} parent=1 // pred_fallthru
      _
    // Predicated region
    $region18: #{_lambda_.3} parent=1 // pred_check
      _
    $region19: #{_lambda_.3} parent=1 // pred_check_branch
      %246 = sbr.rel (0) target = $region21
    $region20: #{_lambda_.3} parent=1 // pred_region
      %247 = dma.done [#allocation3], 128
    $region21: #{_lambda_.3} parent=1 // pred_fallthru
      _
    // Predicated region
    $region22: #{_lambda_.3} parent=1 // pred_check
      _
    $region23: #{_lambda_.3} parent=1 // pred_check_branch
      %249 = sbr.rel (0) target = $region25
    $region24: #{_lambda_.3} parent=1 // pred_region
      _
    $region25: #{_lambda_.3} parent=1 // pred_fallthru
      _
    %250 = vsyncpa [#allocation3], 1

</llo_original>
